<compile_context>
chip_gen: v7x
topology: tpu7x:2x2x1
jax: 0.10.0
libtpu: 0.0.40
codegen_flags: <defaults>
</compile_context>

<pallas_src>
import jax
import jax.numpy as jnp
from jax.experimental import pallas as pl
from jax.experimental.pallas import tpu as pltpu

_LANE = 128
_VMEM_TILE_BUDGET = 32 * 1024 * 1024   # bytes used for tile sizing (portable)
_VMEM_LIMIT = 48 * 1024 * 1024         # explicit scoped-VMEM limit (< v7x 64 MiB phys)
_MAX_TILE_E = 4096                     # review: 2048-4096 is enough to amortize grid steps


def _round_up(x, m):
    return (x + m - 1) // m * m


def _const_spec(shape):
    """BlockSpec for operands whose index_map is constant (weights/biases).

    Single-buffered when the installed Pallas supports pipeline_mode; falls
    back to the default (double-buffered) spec otherwise.
    """
    index_map = lambda i: (0,) * len(shape)
    try:
        return pl.BlockSpec(shape, index_map, pipeline_mode=pl.Buffered(1))
    except (TypeError, AttributeError, ValueError):
        return pl.BlockSpec(shape, index_map)


def _edge_mlp_tail(h, w2_ref, b2_ref, o_ref):
    # h: (TE, H) f32 = relu(lin1). The N=1 second matmul is a VPU multiply +
    # lane reduce (avoids a wasteful N=1 MXU pass); b2 comes from SMEM.
    logit = jnp.sum(h * w2_ref[...], axis=-1) + b2_ref[0]
    # NOTE: the (TE,) sublane->lane relayout into the lane-dense (1,1,TE) block
    # is tile_e/128 vregs of XLU work per tile -- tiny next to the matmuls.
    # TODO(synk): switch to the transposed (H, tile_e) formulation if XLU binds.
    o_ref[...] = jax.nn.sigmoid(logit).reshape(o_ref.shape)


def _fused_kernel(z_ref, w1_ref, b1_ref, w2_ref, b2_ref, o_ref):
    # z_ref: (TE, 2H) bf16, w1_ref: (2H, H) bf16 -- single K=2H dot (2H <= 128).
    h = jnp.dot(z_ref[...], w1_ref[...], preferred_element_type=jnp.float32)
    h = jnp.maximum(h + b1_ref[...], 0.0)
    _edge_mlp_tail(h, w2_ref, b2_ref, o_ref)


def _split_kernel(zs_ref, zd_ref, w1t_ref, w1b_ref, b1_ref, w2_ref, b2_ref, o_ref):
    # Concat eliminated: zs @ w1_top + zd @ w1_bot == cat(zs, zd) @ w1.
    h = (jnp.dot(zs_ref[...], w1t_ref[...], preferred_element_type=jnp.float32)
         + jnp.dot(zd_ref[...], w1b_ref[...], preferred_element_type=jnp.float32))
    h = jnp.maximum(h + b1_ref[...], 0.0)
    _edge_mlp_tail(h, w2_ref, b2_ref, o_ref)


def _choose_tile_e(E, H, in_bytes):
    """Largest lane-multiple edge tile that fits the VMEM budget."""
    # Weights (single-buffered intent) + biases.
    weight_bytes = 2 * H * H * in_bytes + 8 * H + 1024
    # Per-edge VMEM: 2H activation values (double-buffered) + f32 output (x2).
    per_edge = 4 * H * in_bytes + 8
    avail = max(_VMEM_TILE_BUDGET - weight_bytes - (1 << 20), per_edge * _LANE)
    tile = (avail // per_edge) // _LANE * _LANE
    tile = max(_LANE, min(tile, _MAX_TILE_E))
    # v7x has 2 TensorCores: keep >= 2 parallel tiles whenever E allows it.
    tile = min(tile, _round_up(max(-(-E // 2), 1), _LANE))
    return tile


def edge_decoder_forward(z_src, z_dst, edge_label_index, params):
    """JAX/Pallas equivalent of EdgeDecoder.forward."""
    w1, b1, w2, b2 = params                      # w1: (2H,H), b1: (H,), w2: (H,1), b2: (1,)
    H = w1.shape[1]

    row, col = edge_label_index[0], edge_label_index[1]
    E = int(row.shape[0])
    if E == 0:                                   # guard: empty edge set
        return jnp.zeros((0,), jnp.float32)

    in_dtype = jnp.bfloat16
    in_bytes = 2
    tile_e = _choose_tile_e(E, H, in_bytes)
    e_pad = _round_up(E, tile_e)
    num_tiles = e_pad // tile_e

    pad = e_pad - E
    if pad:
        # Pad with index 0 (always in-bounds); padded lanes are sliced off below.
        row = jnp.pad(row, (0, pad))
        col = jnp.pad(col, (0, pad))

    # Gather stays in XLA, but on bf16 node tables so the materialized
    # (e_pad, H) intermediates and the kernel's input streams are half-width.
    zs = z_src.astype(in_dtype)[row]             # (e_pad, H) bf16
    zd = z_dst.astype(in_dtype)[col]             # (e_pad, H) bf16

    b1_row = b1.reshape(1, H).astype(jnp.float32)
    w2_row = w2.reshape(1, H).astype(jnp.float32)
    b2_vec = b2.reshape(1).astype(jnp.float32)

    fused = (2 * H) <= _LANE
    if fused:
        z_in = jnp.concatenate([zs, zd], axis=-1)            # (e_pad, 2H) bf16
        kernel = _fused_kernel
        inputs = (z_in, w1.astype(in_dtype), b1_row, w2_row, b2_vec)
        in_specs = [
            pl.BlockSpec((tile_e, 2 * H), lambda i: (i, 0)),  # fused edge tile
            _const_spec((2 * H, H)),                          # w1
            _const_spec((1, H)),                              # b1
            _const_spec((1, H)),                              # w2 row
            pl.BlockSpec(memory_space=pltpu.MemorySpace.SMEM),  # b2 scalar
        ]
    else:
        kernel = _split_kernel
        inputs = (zs, zd,
                  w1[:H, :].astype(in_dtype), w1[H:, :].astype(in_dtype),
                  b1_row, w2_row, b2_vec)
        in_specs = [
            pl.BlockSpec((tile_e, H), lambda i: (i, 0)),      # zs tile
            pl.BlockSpec((tile_e, H), lambda i: (i, 0)),      # zd tile
            _const_spec((H, H)),                              # w1 top half
            _const_spec((H, H)),                              # w1 bottom half
            _const_spec((1, H)),                              # b1
            _const_spec((1, H)),                              # w2 row
            pl.BlockSpec(memory_space=pltpu.MemorySpace.SMEM),  # b2 scalar
        ]

    cost = pl.CostEstimate(
        flops=2 * e_pad * 2 * H * H + 3 * e_pad * H,
        transcendentals=e_pad,
        bytes_accessed=(e_pad * 2 * H * in_bytes            # activations in
                        + 2 * H * H * in_bytes + 8 * H      # weights/biases
                        + e_pad * 4),                        # sigmoid out
    )

    out = pl.pallas_call(
        kernel,
        out_shape=jax.ShapeDtypeStruct((num_tiles, 1, tile_e), jnp.float32),
        grid_spec=pltpu.PrefetchScalarGridSpec(
            num_scalar_prefetch=0,
            grid=(num_tiles,),
            in_specs=in_specs,
            out_specs=pl.BlockSpec((1, 1, tile_e), lambda i: (i, 0, 0)),
        ),
        compiler_params=pltpu.CompilerParams(
            dimension_semantics=("parallel",),
            vmem_limit_bytes=_VMEM_LIMIT,
        ),
        cost_estimate=cost,
    )(*inputs)

    return out.reshape(-1)[:E]                   # z.view(-1), padding dropped


def init_params(key, hidden_channels):
    """Deterministic PyTorch-Linear-style init (uniform +- 1/sqrt(fan_in))."""
    H = hidden_channels
    k1, k2, k3, k4 = jax.random.split(key, 4)
    bound1 = 1.0 / jnp.sqrt(2.0 * H)
    bound2 = 1.0 / jnp.sqrt(float(H))
    w1 = jax.random.uniform(k1, (2 * H, H), jnp.float32, -bound1, bound1)
    b1 = jax.random.uniform(k2, (H,), jnp.float32, -bound1, bound1)
    w2 = jax.random.uniform(k3, (H, 1), jnp.float32, -bound2, bound2)
    b2 = jax.random.uniform(k4, (1,), jnp.float32, -bound2, bound2)
    return (w1, b1, w2, b2)


def reference_forward(z_src, z_dst, edge_label_index, params):
    w1, b1, w2, b2 = params
    row, col = edge_label_index[0], edge_label_index[1]
    z = jnp.concatenate([z_src[row], z_dst[col]], axis=-1)
    z = jax.nn.relu(z @ w1 + b1)
    z = jax.nn.sigmoid(z @ w2 + b2)
    return z.reshape(-1)


def _run_case(H, E, n_src, n_dst, key):
    k_params, k_src, k_dst, k_row, k_col = jax.random.split(key, 5)
    params = init_params(k_params, H)
    z_src = jax.random.normal(k_src, (n_src, H), jnp.float32)
    z_dst = jax.random.normal(k_dst, (n_dst, H), jnp.float32)
    row = jax.random.randint(k_row, (E,), 0, n_src, jnp.int32)
    col = jax.random.randint(k_col, (E,), 0, n_dst, jnp.int32)
    edge_label_index = jnp.stack([row, col], axis=0)          # (2, E)

    out = jax.block_until_ready(
        edge_decoder_forward(z_src, z_dst, edge_label_index, params))
    ref = reference_forward(z_src, z_dst, edge_label_index, params)
    assert out.shape == (E,)
    # bf16 matmul inputs (f32 accumulation) => relaxed tolerance vs f32 reference.
    assert jnp.allclose(out, ref, atol=2e-2, rtol=2e-2), f"mismatch H={H} E={E}"
    return out


if __name__ == "__main__":
    key = jax.random.PRNGKey(0)
    k1, k2, k3 = jax.random.split(key, 3)

    # Fused (2H <= 128) path, E not a tile multiple -> pad + slice, 2 tiles.
    _run_case(H=32, E=200, n_src=16, n_dst=16, key=k1)
    # Split-weight path (2H > 128), 2 tiles.
    _run_case(H=128, E=200, n_src=16, n_dst=16, key=k2)
    # Single-tile grid.
    _run_case(H=32, E=100, n_src=16, n_dst=16, key=k3)

    # E == 0 guard (no pallas_call issued).
    empty = edge_decoder_forward(
        jnp.zeros((4, 32), jnp.float32), jnp.zeros((4, 32), jnp.float32),
        jnp.zeros((2, 0), jnp.int32), init_params(jax.random.PRNGKey(1), 32))
    assert empty.shape == (0,)

    print("KERNEL_OK")
</pallas_src>

<mosaic_0001>
module attributes {stable_mosaic.version = 11 : i64} {
  func.func @_fused_kernel(%arg0: i32, %arg1: memref<128x64xbf16, #tpu.memory_space<vmem>>, %arg2: memref<64x32xbf16, #tpu.memory_space<vmem>>, %arg3: memref<1x32xf32, #tpu.memory_space<vmem>>, %arg4: memref<1x32xf32, #tpu.memory_space<vmem>>, %arg5: memref<1xf32, #tpu.memory_space<smem>>, %arg6: memref<1x1x128xf32, #tpu.memory_space<vmem>>) attributes {dimension_semantics = [#tpu.dimension_semantics<parallel>], iteration_bounds = array<i64: 2>, scalar_prefetch = 0 : i64, scratch_operands = 0 : i64, tpu.core_type = #tpu.core_type<tc>, window_params = [{transform_indices = @transform_0, window_bounds = array<i64: 128, 64>}, {pipeline_mode = #tpu.pipeline_mode<synchronous>, transform_indices = @transform_1, window_bounds = array<i64: 64, 32>}, {pipeline_mode = #tpu.pipeline_mode<synchronous>, transform_indices = @transform_2, window_bounds = array<i64: 1, 32>}, {pipeline_mode = #tpu.pipeline_mode<synchronous>, transform_indices = @transform_3, window_bounds = array<i64: 1, 32>}, {transform_indices = @transform_4, window_bounds = array<i64: 1>}, {transform_indices = @transform_5, window_bounds = array<i64: 1, 1, 128>}]} {
    %c0 = arith.constant 0 : index
    %c0_0 = arith.constant 0 : index
    %0 = vector.load %arg1[%c0, %c0_0] : memref<128x64xbf16, #tpu.memory_space<vmem>>, vector<128x64xbf16>
    %c0_1 = arith.constant 0 : index
    %c0_2 = arith.constant 0 : index
    %1 = vector.load %arg2[%c0_1, %c0_2] : memref<64x32xbf16, #tpu.memory_space<vmem>>, vector<64x32xbf16>
    %cst = arith.constant dense<0.000000e+00> : vector<128x32xf32>
    %2 = tpu.matmul %0, %1, %cst {dimension_numbers = #tpu.dot_dimension_numbers<[1], [0], [0], [1], [0, 0, 1, 1], [], []>} : vector<128x64xbf16>, vector<64x32xbf16>, vector<128x32xf32> -> vector<128x32xf32>
    %c0_3 = arith.constant 0 : index
    %c0_4 = arith.constant 0 : index
    %3 = vector.load %arg3[%c0_3, %c0_4] : memref<1x32xf32, #tpu.memory_space<vmem>>, vector<1x32xf32>
    %4 = vector.broadcast %3 : vector<1x32xf32> to vector<128x32xf32>
    %5 = arith.addf %2, %4 : vector<128x32xf32>
    %cst_5 = arith.constant 0.000000e+00 : f32
    %6 = vector.broadcast %cst_5 : f32 to vector<128x32xf32>
    %7 = arith.maximumf %5, %6 : vector<128x32xf32>
    %c0_6 = arith.constant 0 : index
    %c0_7 = arith.constant 0 : index
    %8 = vector.load %arg4[%c0_6, %c0_7] : memref<1x32xf32, #tpu.memory_space<vmem>>, vector<1x32xf32>
    %9 = vector.broadcast %8 : vector<1x32xf32> to vector<128x32xf32>
    %10 = arith.mulf %7, %9 : vector<128x32xf32>
    %cst_8 = arith.constant dense<0.000000e+00> : vector<128xf32>
    %11 = vector.multi_reduction <add>, %10, %cst_8 [1] : vector<128x32xf32> to vector<128xf32>
    %c0_9 = arith.constant 0 : index
    %12 = memref.load %arg5[%c0_9] : memref<1xf32, #tpu.memory_space<smem>>
    %13 = vector.broadcast %12 : f32 to vector<128xf32>
    %14 = arith.addf %11, %13 : vector<128xf32>
    %15 = arith.negf %14 : vector<128xf32>
    %16 = math.exp %15 : vector<128xf32>
    %cst_10 = arith.constant 1.000000e+00 : f32
    %17 = vector.broadcast %cst_10 : f32 to vector<128xf32>
    %18 = arith.addf %17, %16 : vector<128xf32>
    %19 = arith.divf %17, %18 : vector<128xf32>
    %20 = vector.shape_cast %19 : vector<128xf32> to vector<1x1x128xf32>
    %c0_11 = arith.constant 0 : index
    %c0_12 = arith.constant 0 : index
    %c0_13 = arith.constant 0 : index
    %21 = vector.load %arg6[%c0_11, %c0_12, %c0_13] : memref<1x1x128xf32, #tpu.memory_space<vmem>>, vector<1x1x128xf32>
    tpu.vector_store %arg6[%c0_11, %c0_12, %c0_13], %20 {strides = array<i32>} : memref<1x1x128xf32, #tpu.memory_space<vmem>>, vector<1x1x128xf32>,
    return
  }
  func.func @transform_0(%arg0: i32) -> (i32, i32) {
    %c0_i32 = arith.constant 0 : i32
    %c0_i32_0 = arith.constant 0 : i32
    return %arg0, %c0_i32 : i32, i32
  }
  func.func @transform_1(%arg0: i32) -> (i32, i32) {
    %c0_i32 = arith.constant 0 : i32
    %c0_i32_0 = arith.constant 0 : i32
    %c0_i32_1 = arith.constant 0 : i32
    return %c0_i32, %c0_i32_0 : i32, i32
  }
  func.func @transform_2(%arg0: i32) -> (i32, i32) {
    %c0_i32 = arith.constant 0 : i32
    %c0_i32_0 = arith.constant 0 : i32
    %c0_i32_1 = arith.constant 0 : i32
    return %c0_i32, %c0_i32_0 : i32, i32
  }
  func.func @transform_3(%arg0: i32) -> (i32, i32) {
    %c0_i32 = arith.constant 0 : i32
    %c0_i32_0 = arith.constant 0 : i32
    %c0_i32_1 = arith.constant 0 : i32
    return %c0_i32, %c0_i32_0 : i32, i32
  }
  func.func @transform_4(%arg0: i32) -> i32 {
    %c0_i32 = arith.constant 0 : i32
    %c0_i32_0 = arith.constant 0 : i32
    return %c0_i32 : i32
  }
  func.func @transform_5(%arg0: i32) -> (i32, i32, i32) {
    %c0_i32 = arith.constant 0 : i32
    %c0_i32_0 = arith.constant 0 : i32
    %c0_i32_1 = arith.constant 0 : i32
    return %arg0, %c0_i32, %c0_i32_0 : i32, i32, i32
  }
}

</mosaic_0001>

<llo_original>
// kernel: tpu_custom_call.1
$region0: #{tpu_custom_call.1}
  #allocation0 [shape = 'u32[]', space=smem, size = 0x4, offset = 0x4, fixed_abs, tag = 'smem constant byte address 0x4 - core index']
  #allocation1 [shape = 'u32[144,128]{1,0:T(1,128)}', space=vmem, size = 0x12000, scoped, tag = 'internal scratch']
  #allocation2 [shape = 'f32[1]{0:T(128)S(6)}', space=smem, size = 0x200, scoped, tag = 'scoped memory for tpu_custom_call.1']
  %s0 = inlined_call_operand.vmem [shape: bf16[256,64], index: 0, kind: input, shape index: {}]
  %s1 = inlined_call_operand.vmem [shape: bf16[64,32], index: 1, kind: input, shape index: {}]
  %s2 = inlined_call_operand.vmem [shape: f32[1,32], index: 2, kind: input, shape index: {}]
  %s3 = inlined_call_operand.vmem [shape: f32[1,32], index: 3, kind: input, shape index: {}]
  %s4 = inlined_call_operand.<no memory space> [shape: f32[1], index: 4, kind: input, shape index: {}]
  %s5 = inlined_call_operand.hbm [shape: f32[2,1,128], index: 5, kind: output, shape index: {}]
  %s6 = sld [smem:[#allocation0]]
  $region53: #{tpu_custom_call.1} parent=0
    _
  %s8 = ssub.s32 1, %s6
  %s9 = scalar_select 0, %s8, %s6
  %10 = sst [smem:[#allocation2]] %s4
  $region1: #{tpu_custom_call.1} parent=0
    #allocation3 [shape = 'u8[1024]{0}', space=vmem, size = 0x400, scoped, tag = 'output window, operand 0']
    #allocation4 [shape = 's32[2]{0}', space=sflag, size = 0x8, scoped, tag = 'scoped memory for tpu_custom_call.1']
    %11 = vsyncpa [#allocation4], 0
    %s12 = scalar_lea.sflag [#allocation4], 1
    %13 = vsyncpa %s12, 0
    loop: start=0, step=1, limit=4
    $region2: #{tpu_custom_call.1} parent=1 // loop_pre_header
      _
    $region3: #{tpu_custom_call.1} parent=1 // loop_header
      %s15 = sphi 0, %s19
      %p16 = scmp.ge.s32.totalorder %s15, 4
      %s25 = sphi 0, %s27
      %s28 = sphi 0, %s25
      %s29 = sphi 0, %s28
      %s45 = sphi 0, %s29
      %s49 = sphi 0, %s49
      %s51 = sphi 0, %s49
      %s52 = sphi 0, %s51
      %s66 = sphi 0, %s52
      %s70 = sphi 0, %s70
      %s72 = sphi 0, %s70
      %s73 = sphi 0, %s72
      %s87 = sphi 0, %s73
      %s91 = sphi 0, %s91
      %s93 = sphi 0, %s91
      %s94 = sphi 0, %s93
      %s108 = sphi 0, %s94
      %s112 = sphi 0, %s112
      %s114 = sphi 0, %s112
      %s115 = sphi 0, %s114
      %s129 = sphi 0, %s115
      %s135 = sphi 0, %s137
      %s138 = sphi 0, %s135
      %s139 = sphi 0, %s138
      %s155 = sphi 0, %s139
    $region4: #{tpu_custom_call.1} parent=1 // loop_header_branch
      %18 = sbr.rel (%p16) target = $region8
    $region5: #{tpu_custom_call.1} parent=1 // loop_body
      %s20 = ssub.s32 %s15, 1
      %s21 = ssub.s32 %s15, 2
      %s22 = sadd.s32 %s15, 1
      %s23 = ssub.s32 %s15, %s22
      %p24 = scmp.eq.s32.totalorder %s23, 0
      %s26 = sadd.s32 %s25, 1
      %s27 = scalar_select %p24, %s25, %s26
      %p30 = pneg %p24
      %p31 = scmp.eq.s32.totalorder %s15, 1
      %p32 = por %p30, %p31
      %p33 = scmp.ne.s32.totalorder %s25, %s28
      %p34 = scmp.eq.s32.totalorder %s15, 0
      %p35 = por %p33, %p34
      %p36 = scmp.ne.s32.totalorder %s25, %s28
      %p37 = scmp.eq.s32.totalorder %s20, 1
      %p38 = por %p36, %p37
      %p39 = scmp.ne.s32.totalorder %s28, %s29
      %p40 = scmp.eq.s32.totalorder %s20, 0
      %p41 = por %p39, %p40
      %p42 = scmp.ne.s32.totalorder %s28, %s29
      %p43 = scmp.eq.s32.totalorder %s21, 1
      %p44 = por %p42, %p43
      %p46 = scmp.ne.s32.totalorder %s29, %s45
      %p47 = scmp.eq.s32.totalorder %s21, 0
      %p48 = por %p46, %p47
      %s50 = sadd.s32 %s49, 1
      %p53 = scmp.eq.s32.totalorder %s15, 1
      %p54 = scmp.ne.s32.totalorder %s49, %s51
      %p55 = scmp.eq.s32.totalorder %s15, 0
      %p56 = por %p54, %p55
      %p57 = scmp.ne.s32.totalorder %s49, %s51
      %p58 = scmp.eq.s32.totalorder %s20, 1
      %p59 = por %p57, %p58
      %p60 = scmp.ne.s32.totalorder %s51, %s52
      %p61 = scmp.eq.s32.totalorder %s20, 0
      %p62 = por %p60, %p61
      %p63 = scmp.ne.s32.totalorder %s51, %s52
      %p64 = scmp.eq.s32.totalorder %s21, 1
      %p65 = por %p63, %p64
      %p67 = scmp.ne.s32.totalorder %s52, %s66
      %p68 = scmp.eq.s32.totalorder %s21, 0
      %p69 = por %p67, %p68
      %s71 = sadd.s32 %s70, 1
      %p74 = scmp.eq.s32.totalorder %s15, 1
      %p75 = scmp.ne.s32.totalorder %s70, %s72
      %p76 = scmp.eq.s32.totalorder %s15, 0
      %p77 = por %p75, %p76
      %p78 = scmp.ne.s32.totalorder %s70, %s72
      %p79 = scmp.eq.s32.totalorder %s20, 1
      %p80 = por %p78, %p79
      %p81 = scmp.ne.s32.totalorder %s72, %s73
      %p82 = scmp.eq.s32.totalorder %s20, 0
      %p83 = por %p81, %p82
      %p84 = scmp.ne.s32.totalorder %s72, %s73
      %p85 = scmp.eq.s32.totalorder %s21, 1
      %p86 = por %p84, %p85
      %p88 = scmp.ne.s32.totalorder %s73, %s87
      %p89 = scmp.eq.s32.totalorder %s21, 0
      %p90 = por %p88, %p89
      %s92 = sadd.s32 %s91, 1
      %p95 = scmp.eq.s32.totalorder %s15, 1
      %p96 = scmp.ne.s32.totalorder %s91, %s93
      %p97 = scmp.eq.s32.totalorder %s15, 0
      %p98 = por %p96, %p97
      %p99 = scmp.ne.s32.totalorder %s91, %s93
      %p100 = scmp.eq.s32.totalorder %s20, 1
      %p101 = por %p99, %p100
      %p102 = scmp.ne.s32.totalorder %s93, %s94
      %p103 = scmp.eq.s32.totalorder %s20, 0
      %p104 = por %p102, %p103
      %p105 = scmp.ne.s32.totalorder %s93, %s94
      %p106 = scmp.eq.s32.totalorder %s21, 1
      %p107 = por %p105, %p106
      %p109 = scmp.ne.s32.totalorder %s94, %s108
      %p110 = scmp.eq.s32.totalorder %s21, 0
      %p111 = por %p109, %p110
      %s113 = sadd.s32 %s112, 1
      %p116 = scmp.eq.s32.totalorder %s15, 1
      %p117 = scmp.ne.s32.totalorder %s112, %s114
      %p118 = scmp.eq.s32.totalorder %s15, 0
      %p119 = por %p117, %p118
      %p120 = scmp.ne.s32.totalorder %s112, %s114
      %p121 = scmp.eq.s32.totalorder %s20, 1
      %p122 = por %p120, %p121
      %p123 = scmp.ne.s32.totalorder %s114, %s115
      %p124 = scmp.eq.s32.totalorder %s20, 0
      %p125 = por %p123, %p124
      %p126 = scmp.ne.s32.totalorder %s114, %s115
      %p127 = scmp.eq.s32.totalorder %s21, 1
      %p128 = por %p126, %p127
      %p130 = scmp.ne.s32.totalorder %s115, %s129
      %p131 = scmp.eq.s32.totalorder %s21, 0
      %p132 = por %p130, %p131
      %s133 = ssub.s32 %s15, %s22
      %p134 = scmp.eq.s32.totalorder %s133, 0
      %s136 = sadd.s32 %s135, 1
      %s137 = scalar_select %p134, %s135, %s136
      %p140 = pneg %p134
      %p141 = scmp.eq.s32.totalorder %s15, 1
      %p142 = por %p140, %p141
      %p143 = scmp.ne.s32.totalorder %s135, %s138
      %p144 = scmp.eq.s32.totalorder %s15, 0
      %p145 = por %p143, %p144
      %p146 = scmp.ne.s32.totalorder %s135, %s138
      %p147 = scmp.eq.s32.totalorder %s20, 1
      %p148 = por %p146, %p147
      %p149 = scmp.ne.s32.totalorder %s138, %s139
      %p150 = scmp.eq.s32.totalorder %s20, 0
      %p151 = por %p149, %p150
      %p152 = scmp.ne.s32.totalorder %s138, %s139
      %p153 = scmp.eq.s32.totalorder %s21, 1
      %p154 = por %p152, %p153
      %p156 = scmp.ne.s32.totalorder %s139, %s155
      %p157 = scmp.eq.s32.totalorder %s21, 0
      %p158 = por %p156, %p157
      %p159 = scmp.le.s32.totalorder 1, %s15
      %p160 = scmp.lt.s32.totalorder %s15, 3
      %p161 = pnand %p159, %p160
      %p162 = pneg %p161
      // Predicated region
      $region9: #{tpu_custom_call.1} parent=5 // pred_check
        _
      $region10: #{tpu_custom_call.1} parent=5 // pred_check_branch
        %164 = sbr.rel (%p161) target = $region12
      $region11: #{tpu_custom_call.1} parent=5 // pred_region
        %s165 = ssub.s32 %s15, 1
        // Predicated region
        $region13: #{tpu_custom_call.1} parent=11 // pred_check
          %p166 = pneg %p62
        $region14: #{tpu_custom_call.1} parent=11 // pred_check_branch
          %168 = sbr.rel (%p166) target = $region16
        $region15: #{tpu_custom_call.1} parent=11 // pred_region
          _
        $region16: #{tpu_custom_call.1} parent=11 // pred_fallthru
          _
        // Predicated region
        $region17: #{tpu_custom_call.1} parent=11 // pred_check
          %p169 = pneg %p83
        $region18: #{tpu_custom_call.1} parent=11 // pred_check_branch
          %171 = sbr.rel (%p169) target = $region20
        $region19: #{tpu_custom_call.1} parent=11 // pred_region
          _
        $region20: #{tpu_custom_call.1} parent=11 // pred_fallthru
          _
        // Predicated region
        $region21: #{tpu_custom_call.1} parent=11 // pred_check
          %p172 = pneg %p104
        $region22: #{tpu_custom_call.1} parent=11 // pred_check_branch
          %174 = sbr.rel (%p172) target = $region24
        $region23: #{tpu_custom_call.1} parent=11 // pred_region
          _
        $region24: #{tpu_custom_call.1} parent=11 // pred_fallthru
          _
        // Predicated region
        $region25: #{tpu_custom_call.1} parent=11 // pred_check
          %p175 = pneg %p125
        $region26: #{tpu_custom_call.1} parent=11 // pred_check_branch
          %177 = sbr.rel (%p175) target = $region28
        $region27: #{tpu_custom_call.1} parent=11 // pred_region
          _
        $region28: #{tpu_custom_call.1} parent=11 // pred_fallthru
          _
      $region12: #{tpu_custom_call.1} parent=5 // pred_fallthru
        _
      %p178 = scmp.lt.s32.totalorder %s15, 2
      // Predicated region
      $region29: #{tpu_custom_call.1} parent=5 // pred_check
        %p179 = pneg %p178
      $region30: #{tpu_custom_call.1} parent=5 // pred_check_branch
        %181 = sbr.rel (%p179) target = $region32
      $region31: #{tpu_custom_call.1} parent=5 // pred_region
        // Predicated region
        $region33: #{tpu_custom_call.1} parent=31 // pred_check
          %p182 = pneg %p35
        $region34: #{tpu_custom_call.1} parent=31 // pred_check_branch
          %184 = sbr.rel (%p182) target = $region36
        $region35: #{tpu_custom_call.1} parent=31 // pred_region
          %s185 = smul.u32 16, %s15
          %p186 = scmp.lt.s32.totalorder %s185, 31
          %s187 = scalar_select %p186, %s185, 31
          %s188 = smul.addr %s187, 4
          %s189 = scalar_lea.vmem %s0, %s188
          %s190 = smul.u32 16, %s15
        $region36: #{tpu_custom_call.1} parent=31 // pred_fallthru
          _
      $region32: #{tpu_custom_call.1} parent=5 // pred_fallthru
        _
      %p191 = scmp.le.s32.totalorder 1, %s15
      %p192 = scmp.lt.s32.totalorder %s15, 3
      %p193 = pnand %p191, %p192
      %p194 = pneg %p193
      // Predicated region
      $region37: #{tpu_custom_call.1} parent=5 // pred_check
        _
      $region38: #{tpu_custom_call.1} parent=5 // pred_check_branch
        %196 = sbr.rel (%p193) target = $region40
      $region39: #{tpu_custom_call.1} parent=5 // pred_region
        %s197 = ssub.s32 %s15, 1
        %s198 = smul.u32 16, %s20
        %p199 = scmp.lt.s32.totalorder %s198, 31
        %s200 = scalar_select %p199, %s198, 31
        %s201 = smul.addr %s200, 4
        %s202 = scalar_lea.vmem %s0, %s201
        %p203 = pneg %p41
        %p204 = pneg %p38
        %p205 = pneg %p62
        %p206 = pneg %p59
        %p207 = pneg %p83
        %p208 = pneg %p80
        %p209 = pneg %p104
        %p210 = pneg %p101
        %p211 = pneg %p125
        %p212 = pneg %p122
        %p213 = pneg %p151
        %p214 = pneg %p148
        %s215 = sand.u32 %s138, 1
        %s216 = scalar_lea.sflag [#allocation4], %s215
        %s217 = sand.u32 %s138, 1
        %s218 = scalar_lea.vmem [#allocation3], %s217
        %s219 = smul.u32 16, %s20
        %p220 = scmp.lt.s32.totalorder %s219, 31
        %s221 = scalar_select %p220, %s219, 31
        %s222 = smul.addr %s221, 4
        %s223 = scalar_lea.vmem %s0, %s222
        %s224 = smul.u32 16, %s20
        %v226 = vld [vmem:[%s223] sm:$0xf]
        %v227 = vld [vmem:[%s223 + $0x4] sm:$0xf]
        %v228 = vld [vmem:[%s223 + $0x8] sm:$0xf]
        %v229 = vld [vmem:[%s223 + $0xc] sm:$0xf]
        %v230 = vld [vmem:[%s223 + $0x10] sm:$0xf]
        %v231 = vld [vmem:[%s223 + $0x14] sm:$0xf]
        %v232 = vld [vmem:[%s223 + $0x18] sm:$0xf]
        %v233 = vld [vmem:[%s223 + $0x1c] sm:$0xf]
        %v234 = vld [vmem:[%s223 + $0x20] sm:$0xf]
        %v235 = vld [vmem:[%s223 + $0x24] sm:$0xf]
        %v236 = vld [vmem:[%s223 + $0x28] sm:$0xf]
        %v237 = vld [vmem:[%s223 + $0x2c] sm:$0xf]
        %v238 = vld [vmem:[%s223 + $0x30] sm:$0xf]
        %v239 = vld [vmem:[%s223 + $0x34] sm:$0xf]
        %v240 = vld [vmem:[%s223 + $0x38] sm:$0xf]
        %v241 = vld [vmem:[%s223 + $0x3c] sm:$0xf]
        %v242 = vld [vmem:[%s1] sm:$0xf]
        %v243 = vld [vmem:[%s1 + $0x4] sm:$0xf]
        %v244 = vld [vmem:[%s1 + $0x8] sm:$0xf]
        %v245 = vld [vmem:[%s1 + $0xc] sm:$0xf]
        %v246 = vld [vmem:[%s1 + $0x10] sm:$0xf]
        %v247 = vld [vmem:[%s1 + $0x14] sm:$0xf]
        %v248 = vld [vmem:[%s1 + $0x18] sm:$0xf]
        %v249 = vld [vmem:[%s1 + $0x1c] sm:$0xf]
        %v250 = vld [vmem:[%s2] sm:$0x1]
        %v252 = vlaneseq
        %v253 = vshrl.u32 %v252, 7
        %v254 = vsub.s32 0, %v253
        %v255 = vrot.slane %v250, %v254
        %v273 = vunpack.c.l.b16 %v226
        %v274 = vunpack.c.l.b16 %v227
        %v275 = vunpack.c.l.b16 %v228
        %v276 = vunpack.c.l.b16 %v229
        %v277 = vunpack.c.l.b16 %v230
        %v278 = vunpack.c.l.b16 %v231
        %v279 = vunpack.c.l.b16 %v232
        %v280 = vunpack.c.l.b16 %v233
        %v281 = vunpack.c.l.b16 %v234
        %v282 = vunpack.c.l.b16 %v235
        %v283 = vunpack.c.l.b16 %v236
        %v284 = vunpack.c.l.b16 %v237
        %v285 = vunpack.c.l.b16 %v238
        %v286 = vunpack.c.l.b16 %v239
        %v287 = vunpack.c.l.b16 %v240
        %v288 = vunpack.c.l.b16 %v241
        %v289 = vpack.c.b16 %v274, %v273
        %v290 = vpack.c.b16 %v276, %v275
        %v291 = vpack.c.b16 %v278, %v277
        %v292 = vpack.c.b16 %v280, %v279
        %v293 = vpack.c.b16 %v282, %v281
        %v294 = vpack.c.b16 %v284, %v283
        %v295 = vpack.c.b16 %v286, %v285
        %v296 = vpack.c.b16 %v288, %v287
        %v305 = vunpack.c.l.b16 %v242
        %v306 = vunpack.c.l.b16 %v243
        %v307 = vunpack.c.l.b16 %v244
        %v308 = vunpack.c.l.b16 %v245
        %v309 = vunpack.c.l.b16 %v246
        %v310 = vunpack.c.l.b16 %v247
        %v311 = vunpack.c.l.b16 %v248
        %v312 = vunpack.c.l.b16 %v249
        %v313 = vpack.c.b16 %v306, %v305
        %v314 = vpack.c.b16 %v308, %v307
        %v315 = vpack.c.b16 %v310, %v309
        %v316 = vpack.c.b16 %v312, %v311
        %vm321 = vcmask 523264
        %v323 = vsel %vm321, %v289, 0
        %v326 = vsel %vm321, %v290, 0
        %v329 = vsel %vm321, %v291, 0
        %v332 = vsel %vm321, %v292, 0
        %v335 = vsel %vm321, %v293, 0
        %v338 = vsel %vm321, %v294, 0
        %v341 = vsel %vm321, %v295, 0
        %v344 = vsel %vm321, %v296, 0
        %346 = vmatprep.subr.bf16.mxu0 0
        %347 = vmatpush1.bf16.msra.mxu0 %v313
        %348 = vmatprep.subr.bf16.mxu0 0
        %349 = vmatpush1.bf16.msra.mxu0 %v314
        %350 = vmatprep.subr.bf16.mxu0 0
        %351 = vmatpush1.bf16.msra.mxu0 %v315
        %352 = vmatprep.subr.bf16.mxu0 0
        %353 = vmatpush1.bf16.msra.mxu0 %v316
        %354 = vmatprep.subr.bf16.mxu0 0
        %355 = vmatpush1.bf16.msra.mxu0 0
        %356 = vmatprep.subr.bf16.mxu0 0
        %357 = vmatpush1.bf16.msra.mxu0 0
        %358 = vmatprep.subr.bf16.mxu0 0
        %359 = vmatpush1.bf16.msra.mxu0 0
        %360 = vmatprep.subr.bf16.mxu0 0
        %361 = vmatpush1.bf16.msra.mxu0 0
        %362 = vmatprep.subr.bf16.mxu0 0
        %363 = vmatpush1.bf16.msra.mxu0 0
        %364 = vmatprep.subr.bf16.mxu0 0
        %365 = vmatpush1.bf16.msra.mxu0 0
        %366 = vmatprep.subr.bf16.mxu0 0
        %367 = vmatpush1.bf16.msra.mxu0 0
        %368 = vmatprep.subr.bf16.mxu0 0
        %369 = vmatpush1.bf16.msra.mxu0 0
        %370 = vmatprep.subr.bf16.mxu0 0
        %371 = vmatpush1.bf16.msra.mxu0 0
        %372 = vmatprep.subr.bf16.mxu0 0
        %373 = vmatpush1.bf16.msra.mxu0 0
        %374 = vmatprep.subr.bf16.mxu0 0
        %375 = vmatpush1.bf16.msra.mxu0 0
        %376 = vmatprep.subr.bf16.mxu0 0
        %377 = vmatpush1.bf16.msra.mxu0 0
        %378 = vmatprep.mubr.bf16.mxu0 0
        %379 = vmatmul.mubr.bf16.gmra.mrb[0].mxu0 %v323
        %v380 = vpop.f32.mrb[0].mxu0
        %v381 = vadd.f32 %v255, %v380
        %v382 = vpop.f32.mrb[0].mxu0
        %v383 = vpop.f32.mrb[0].mxu0
        %v384 = vadd.f32 %v255, %v383
        %v385 = vpop.f32.mrb[0].mxu0
        %386 = vmatprep.mubr.bf16.mxu0 0
        %387 = vmatmul.mubr.bf16.gmra.mrb[0].mxu0 %v326
        %v388 = vpop.f32.mrb[0].mxu0
        %v389 = vadd.f32 %v255, %v388
        %v390 = vpop.f32.mrb[0].mxu0
        %v391 = vpop.f32.mrb[0].mxu0
        %v392 = vadd.f32 %v255, %v391
        %v393 = vpop.f32.mrb[0].mxu0
        %394 = vmatprep.mubr.bf16.mxu0 0
        %395 = vmatmul.mubr.bf16.gmra.mrb[0].mxu0 %v329
        %v396 = vpop.f32.mrb[0].mxu0
        %v397 = vadd.f32 %v255, %v396
        %v398 = vpop.f32.mrb[0].mxu0
        %v399 = vpop.f32.mrb[0].mxu0
        %v400 = vadd.f32 %v255, %v399
        %v401 = vpop.f32.mrb[0].mxu0
        %402 = vmatprep.mubr.bf16.mxu0 0
        %403 = vmatmul.mubr.bf16.gmra.mrb[0].mxu0 %v332
        %v404 = vpop.f32.mrb[0].mxu0
        %v405 = vadd.f32 %v255, %v404
        %v406 = vpop.f32.mrb[0].mxu0
        %v407 = vpop.f32.mrb[0].mxu0
        %v408 = vadd.f32 %v255, %v407
        %v409 = vpop.f32.mrb[0].mxu0
        %410 = vmatprep.mubr.bf16.mxu0 0
        %411 = vmatmul.mubr.bf16.gmra.mrb[0].mxu0 %v335
        %v412 = vpop.f32.mrb[0].mxu0
        %v413 = vadd.f32 %v255, %v412
        %v414 = vpop.f32.mrb[0].mxu0
        %v415 = vpop.f32.mrb[0].mxu0
        %v416 = vadd.f32 %v255, %v415
        %v417 = vpop.f32.mrb[0].mxu0
        %418 = vmatprep.mubr.bf16.mxu0 0
        %419 = vmatmul.mubr.bf16.gmra.mrb[0].mxu0 %v338
        %v420 = vpop.f32.mrb[0].mxu0
        %v421 = vadd.f32 %v255, %v420
        %v422 = vpop.f32.mrb[0].mxu0
        %v423 = vpop.f32.mrb[0].mxu0
        %v424 = vadd.f32 %v255, %v423
        %v425 = vpop.f32.mrb[0].mxu0
        %426 = vmatprep.mubr.bf16.mxu0 0
        %427 = vmatmul.mubr.bf16.gmra.mrb[0].mxu0 %v341
        %v428 = vpop.f32.mrb[0].mxu0
        %v429 = vadd.f32 %v255, %v428
        %v430 = vpop.f32.mrb[0].mxu0
        %v431 = vpop.f32.mrb[0].mxu0
        %v432 = vadd.f32 %v255, %v431
        %v433 = vpop.f32.mrb[0].mxu0
        %434 = vmatprep.mubr.bf16.mxu0 0
        %435 = vmatmul.mubr.bf16.gmra.mrb[0].mxu0 %v344
        %v436 = vpop.f32.mrb[0].mxu0
        %v437 = vadd.f32 %v255, %v436
        %v438 = vpop.f32.mrb[0].mxu0
        %v439 = vpop.f32.mrb[0].mxu0
        %v440 = vadd.f32 %v255, %v439
        %v441 = vpop.f32.mrb[0].mxu0
        %442 = vdwg.mxu0
        %v443 = vmax.f32 %v381, 0.0
        %v444 = vmax.f32 %v384, 0.0
        %v445 = vmax.f32 %v389, 0.0
        %v446 = vmax.f32 %v392, 0.0
        %v447 = vmax.f32 %v397, 0.0
        %v448 = vmax.f32 %v400, 0.0
        %v449 = vmax.f32 %v405, 0.0
        %v450 = vmax.f32 %v408, 0.0
        %v451 = vmax.f32 %v413, 0.0
        %v452 = vmax.f32 %v416, 0.0
        %v453 = vmax.f32 %v421, 0.0
        %v454 = vmax.f32 %v424, 0.0
        %v455 = vmax.f32 %v429, 0.0
        %v456 = vmax.f32 %v432, 0.0
        %v457 = vmax.f32 %v437, 0.0
        %v458 = vmax.f32 %v440, 0.0
        %v459 = vld [vmem:[%s3] sm:$0x1]
        %v461 = vlaneseq
        %v462 = vshrl.u32 %v461, 7
        %v463 = vsub.s32 0, %v462
        %v464 = vrot.slane %v459, %v463
        %v466 = vmul.f32 %v443, %v464
        %v467 = vmul.f32 %v444, %v464
        %v468 = vmul.f32 %v445, %v464
        %v469 = vmul.f32 %v446, %v464
        %v470 = vmul.f32 %v447, %v464
        %v471 = vmul.f32 %v448, %v464
        %v472 = vmul.f32 %v449, %v464
        %v473 = vmul.f32 %v450, %v464
        %v474 = vmul.f32 %v451, %v464
        %v475 = vmul.f32 %v452, %v464
        %v476 = vmul.f32 %v453, %v464
        %v477 = vmul.f32 %v454, %v464
        %v478 = vmul.f32 %v455, %v464
        %v479 = vmul.f32 %v456, %v464
        %v480 = vmul.f32 %v457, %v464
        %v481 = vmul.f32 %v458, %v464
        %vm482 = vcmask 261120
        %v483 = vsel %vm482, %v466, 0.0
        %484 = vadd.xlane.f32.xlu0 %v483
        %v485 = vpop.xlane.xlu0 %484
        %v486 = vsel %vm482, %v467, 0.0
        %487 = vadd.xlane.f32.xlu0 %v486
        %v488 = vpop.xlane.xlu0 %487
        %v489 = vsel %vm482, %v468, 0.0
        %490 = vadd.xlane.f32.xlu0 %v489
        %v491 = vpop.xlane.xlu0 %490
        %v492 = vsel %vm482, %v469, 0.0
        %493 = vadd.xlane.f32.xlu0 %v492
        %v494 = vpop.xlane.xlu0 %493
        %v495 = vsel %vm482, %v470, 0.0
        %496 = vadd.xlane.f32.xlu0 %v495
        %v497 = vpop.xlane.xlu0 %496
        %v498 = vsel %vm482, %v471, 0.0
        %499 = vadd.xlane.f32.xlu0 %v498
        %v500 = vpop.xlane.xlu0 %499
        %v501 = vsel %vm482, %v472, 0.0
        %502 = vadd.xlane.f32.xlu0 %v501
        %v503 = vpop.xlane.xlu0 %502
        %v504 = vsel %vm482, %v473, 0.0
        %505 = vadd.xlane.f32.xlu0 %v504
        %v506 = vpop.xlane.xlu0 %505
        %v507 = vsel %vm482, %v474, 0.0
        %508 = vadd.xlane.f32.xlu0 %v507
        %v509 = vpop.xlane.xlu0 %508
        %v510 = vsel %vm482, %v475, 0.0
        %511 = vadd.xlane.f32.xlu0 %v510
        %v512 = vpop.xlane.xlu0 %511
        %v513 = vsel %vm482, %v476, 0.0
        %514 = vadd.xlane.f32.xlu0 %v513
        %v515 = vpop.xlane.xlu0 %514
        %v516 = vsel %vm482, %v477, 0.0
        %517 = vadd.xlane.f32.xlu0 %v516
        %v518 = vpop.xlane.xlu0 %517
        %v519 = vsel %vm482, %v478, 0.0
        %520 = vadd.xlane.f32.xlu0 %v519
        %v521 = vpop.xlane.xlu0 %520
        %v522 = vsel %vm482, %v479, 0.0
        %523 = vadd.xlane.f32.xlu0 %v522
        %v524 = vpop.xlane.xlu0 %523
        %v525 = vsel %vm482, %v480, 0.0
        %526 = vadd.xlane.f32.xlu0 %v525
        %v527 = vpop.xlane.xlu0 %526
        %v528 = vsel %vm482, %v481, 0.0
        %529 = vadd.xlane.f32.xlu0 %v528
        %v530 = vpop.xlane.xlu0 %529
        %s531 = sld [smem:[#allocation2]]
        %v532 = vstv %s531
        %v533 = vadd.f32 %v485, %v532
        %v534 = vadd.f32 %v488, %v532
        %v535 = vadd.f32 %v491, %v532
        %v536 = vadd.f32 %v494, %v532
        %v537 = vadd.f32 %v497, %v532
        %v538 = vadd.f32 %v500, %v532
        %v539 = vadd.f32 %v503, %v532
        %v540 = vadd.f32 %v506, %v532
        %v541 = vadd.f32 %v509, %v532
        %v542 = vadd.f32 %v512, %v532
        %v543 = vadd.f32 %v515, %v532
        %v544 = vadd.f32 %v518, %v532
        %v545 = vadd.f32 %v521, %v532
        %v546 = vadd.f32 %v524, %v532
        %v547 = vadd.f32 %v527, %v532
        %v548 = vadd.f32 %v530, %v532
        %v549 = vxor.u32 %v533, 2147483648
        %v550 = vxor.u32 %v534, 2147483648
        %v551 = vxor.u32 %v535, 2147483648
        %v552 = vxor.u32 %v536, 2147483648
        %v553 = vxor.u32 %v537, 2147483648
        %v554 = vxor.u32 %v538, 2147483648
        %v555 = vxor.u32 %v539, 2147483648
        %v556 = vxor.u32 %v540, 2147483648
        %v557 = vxor.u32 %v541, 2147483648
        %v558 = vxor.u32 %v542, 2147483648
        %v559 = vxor.u32 %v543, 2147483648
        %v560 = vxor.u32 %v544, 2147483648
        %v561 = vxor.u32 %v545, 2147483648
        %v562 = vxor.u32 %v546, 2147483648
        %v563 = vxor.u32 %v547, 2147483648
        %v564 = vxor.u32 %v548, 2147483648
        %v565 = vmul.f32 %v549, 1.442695
        %v566 = vpow.pop %v565
        %v567 = vmul.f32 %v550, 1.442695
        %v568 = vpow.pop %v567
        %v569 = vmul.f32 %v551, 1.442695
        %v570 = vpow.pop %v569
        %v571 = vmul.f32 %v552, 1.442695
        %v572 = vpow.pop %v571
        %v573 = vmul.f32 %v553, 1.442695
        %v574 = vpow.pop %v573
        %v575 = vmul.f32 %v554, 1.442695
        %v576 = vpow.pop %v575
        %v577 = vmul.f32 %v555, 1.442695
        %v578 = vpow.pop %v577
        %v579 = vmul.f32 %v556, 1.442695
        %v580 = vpow.pop %v579
        %v581 = vmul.f32 %v557, 1.442695
        %v582 = vpow.pop %v581
        %v583 = vmul.f32 %v558, 1.442695
        %v584 = vpow.pop %v583
        %v585 = vmul.f32 %v559, 1.442695
        %v586 = vpow.pop %v585
        %v587 = vmul.f32 %v560, 1.442695
        %v588 = vpow.pop %v587
        %v589 = vmul.f32 %v561, 1.442695
        %v590 = vpow.pop %v589
        %v591 = vmul.f32 %v562, 1.442695
        %v592 = vpow.pop %v591
        %v593 = vmul.f32 %v563, 1.442695
        %v594 = vpow.pop %v593
        %v595 = vmul.f32 %v564, 1.442695
        %v596 = vpow.pop %v595
        %v597 = vadd.f32 %v566, 1.0
        %v598 = vadd.f32 %v568, 1.0
        %v599 = vadd.f32 %v570, 1.0
        %v600 = vadd.f32 %v572, 1.0
        %v601 = vadd.f32 %v574, 1.0
        %v602 = vadd.f32 %v576, 1.0
        %v603 = vadd.f32 %v578, 1.0
        %v604 = vadd.f32 %v580, 1.0
        %v605 = vadd.f32 %v582, 1.0
        %v606 = vadd.f32 %v584, 1.0
        %v607 = vadd.f32 %v586, 1.0
        %v608 = vadd.f32 %v588, 1.0
        %v609 = vadd.f32 %v590, 1.0
        %v610 = vadd.f32 %v592, 1.0
        %v611 = vadd.f32 %v594, 1.0
        %v612 = vadd.f32 %v596, 1.0
        %v613 = vrcp.pop %v597
        %v614 = vmul.f32 1.0, %v613
        %v615 = vrcp.pop %v598
        %v616 = vmul.f32 1.0, %v615
        %v617 = vrcp.pop %v599
        %v618 = vmul.f32 1.0, %v617
        %v619 = vrcp.pop %v600
        %v620 = vmul.f32 1.0, %v619
        %v621 = vrcp.pop %v601
        %v622 = vmul.f32 1.0, %v621
        %v623 = vrcp.pop %v602
        %v624 = vmul.f32 1.0, %v623
        %v625 = vrcp.pop %v603
        %v626 = vmul.f32 1.0, %v625
        %v627 = vrcp.pop %v604
        %v628 = vmul.f32 1.0, %v627
        %v629 = vrcp.pop %v605
        %v630 = vmul.f32 1.0, %v629
        %v631 = vrcp.pop %v606
        %v632 = vmul.f32 1.0, %v631
        %v633 = vrcp.pop %v607
        %v634 = vmul.f32 1.0, %v633
        %v635 = vrcp.pop %v608
        %v636 = vmul.f32 1.0, %v635
        %v637 = vrcp.pop %v609
        %v638 = vmul.f32 1.0, %v637
        %v639 = vrcp.pop %v610
        %v640 = vmul.f32 1.0, %v639
        %v641 = vrcp.pop %v611
        %v642 = vmul.f32 1.0, %v641
        %v643 = vrcp.pop %v612
        %v644 = vmul.f32 1.0, %v643
        %v661 = vlaneseq
        %v662 = vand.u32 %v661, 127
        %v663 = vlaneseq
        %v664 = vshrl.u32 %v663, 7
        %v665 = vsub.s32 %v662, %v664
        %v666 = vrot.slane %v614, %v665
        %v667 = vadd.s32 %v662, 4294967288
        %v668 = vlaneseq
        %v669 = vshrl.u32 %v668, 7
        %v670 = vsub.s32 %v667, %v669
        %v671 = vrot.slane %v616, %v670
        %vm672 = vcmask 130112
        %v673 = vsel %vm672, %v671, %v666
        %v674 = vadd.s32 %v662, 4294967280
        %v675 = vlaneseq
        %v676 = vshrl.u32 %v675, 7
        %v677 = vsub.s32 %v674, %v676
        %v678 = vrot.slane %v618, %v677
        %vm679 = vcmask 195712
        %v680 = vsel %vm679, %v678, %v673
        %v681 = vadd.s32 %v662, 4294967272
        %v682 = vlaneseq
        %v683 = vshrl.u32 %v682, 7
        %v684 = vsub.s32 %v681, %v683
        %v685 = vrot.slane %v620, %v684
        %vm686 = vcmask 261312
        %v687 = vsel %vm686, %v685, %v680
        %v688 = vadd.s32 %v662, 4294967264
        %v689 = vlaneseq
        %v690 = vshrl.u32 %v689, 7
        %v691 = vsub.s32 %v688, %v690
        %v692 = vrot.slane %v622, %v691
        %vm693 = vcmask 326912
        %v694 = vsel %vm693, %v692, %v687
        %v695 = vadd.s32 %v662, 4294967256
        %v696 = vlaneseq
        %v697 = vshrl.u32 %v696, 7
        %v698 = vsub.s32 %v695, %v697
        %v699 = vrot.slane %v624, %v698
        %vm700 = vcmask 392512
        %v701 = vsel %vm700, %v699, %v694
        %v702 = vadd.s32 %v662, 4294967248
        %v703 = vlaneseq
        %v704 = vshrl.u32 %v703, 7
        %v705 = vsub.s32 %v702, %v704
        %v706 = vrot.slane %v626, %v705
        %vm707 = vcmask 458112
        %v708 = vsel %vm707, %v706, %v701
        %v709 = vadd.s32 %v662, 4294967240
        %v710 = vlaneseq
        %v711 = vshrl.u32 %v710, 7
        %v712 = vsub.s32 %v709, %v711
        %v713 = vrot.slane %v628, %v712
        %vm714 = vcmask 523712
        %v715 = vsel %vm714, %v713, %v708
        %v716 = vadd.s32 %v662, 4294967232
        %v717 = vlaneseq
        %v718 = vshrl.u32 %v717, 7
        %v719 = vsub.s32 %v716, %v718
        %v720 = vrot.slane %v630, %v719
        %vm721 = vcmask 589312
        %v722 = vsel %vm721, %v720, %v715
        %v723 = vadd.s32 %v662, 4294967224
        %v724 = vlaneseq
        %v725 = vshrl.u32 %v724, 7
        %v726 = vsub.s32 %v723, %v725
        %v727 = vrot.slane %v632, %v726
        %vm728 = vcmask 654912
        %v729 = vsel %vm728, %v727, %v722
        %v730 = vadd.s32 %v662, 4294967216
        %v731 = vlaneseq
        %v732 = vshrl.u32 %v731, 7
        %v733 = vsub.s32 %v730, %v732
        %v734 = vrot.slane %v634, %v733
        %vm735 = vcmask 720512
        %v736 = vsel %vm735, %v734, %v729
        %v737 = vadd.s32 %v662, 4294967208
        %v738 = vlaneseq
        %v739 = vshrl.u32 %v738, 7
        %v740 = vsub.s32 %v737, %v739
        %v741 = vrot.slane %v636, %v740
        %vm742 = vcmask 786112
        %v743 = vsel %vm742, %v741, %v736
        %v744 = vadd.s32 %v662, 4294967200
        %v745 = vlaneseq
        %v746 = vshrl.u32 %v745, 7
        %v747 = vsub.s32 %v744, %v746
        %v748 = vrot.slane %v638, %v747
        %vm749 = vcmask 851712
        %v750 = vsel %vm749, %v748, %v743
        %v751 = vadd.s32 %v662, 4294967192
        %v752 = vlaneseq
        %v753 = vshrl.u32 %v752, 7
        %v754 = vsub.s32 %v751, %v753
        %v755 = vrot.slane %v640, %v754
        %vm756 = vcmask 917312
        %v757 = vsel %vm756, %v755, %v750
        %v758 = vadd.s32 %v662, 4294967184
        %v759 = vlaneseq
        %v760 = vshrl.u32 %v759, 7
        %v761 = vsub.s32 %v758, %v760
        %v762 = vrot.slane %v642, %v761
        %vm763 = vcmask 982912
        %v764 = vsel %vm763, %v762, %v757
        %v765 = vadd.s32 %v662, 4294967176
        %v766 = vlaneseq
        %v767 = vshrl.u32 %v766, 7
        %v768 = vsub.s32 %v765, %v767
        %v769 = vrot.slane %v644, %v768
        %vm770 = vcmask 1048512
        %v771 = vsel %vm770, %v769, %v764
        %773 = vst [vmem:[%s218] sm:$0x1] %v771
        %s774 = sand.u32 %s138, 1
        %s775 = scalar_lea.sflag [#allocation4], %s774
        %s776 = sand.u32 %s138, 1
        %s777 = scalar_lea.vmem [#allocation3], %s776
        // Predicated region
        $region41: #{tpu_custom_call.1} parent=39 // pred_check
          %p778 = pneg %p148
        $region42: #{tpu_custom_call.1} parent=39 // pred_check_branch
          %780 = sbr.rel (%p778) target = $region44
        $region43: #{tpu_custom_call.1} parent=39 // pred_region
          %s782 = ssub.s32 16, 16
          %783 = vsyncadd %s775, %s782
          %s784 = smul.addr %s20, 16
          %s785 = scalar_lea.hbm %s5, %s784
          %s787 = sshll.u32 %s777, 4
          %s788 = int_to_ptr.vmem [resolvable:$true] %s787
          %790 = dma.vmem_to_hbm [thread:$0]  %s788, 16, %s785, %s775
        $region44: #{tpu_custom_call.1} parent=39 // pred_fallthru
          _
      $region40: #{tpu_custom_call.1} parent=5 // pred_fallthru
        _
      %p791 = scmp.le.s32.totalorder 2, %s15
      // Predicated region
      $region45: #{tpu_custom_call.1} parent=5 // pred_check
        %p792 = pneg %p791
      $region46: #{tpu_custom_call.1} parent=5 // pred_check_branch
        %794 = sbr.rel (%p792) target = $region48
      $region47: #{tpu_custom_call.1} parent=5 // pred_region
        %s795 = ssub.s32 %s15, 2
        // Predicated region
        $region49: #{tpu_custom_call.1} parent=47 // pred_check
          %p796 = pneg %p154
        $region50: #{tpu_custom_call.1} parent=47 // pred_check_branch
          %798 = sbr.rel (%p796) target = $region52
        $region51: #{tpu_custom_call.1} parent=47 // pred_region
          %s799 = sand.u32 %s139, 1
          %s800 = scalar_lea.sflag [#allocation4], %s799
          %s801 = sand.u32 %s139, 1
          %s802 = scalar_lea.vmem [#allocation3], %s801
          %803 = dma.done %s800, 16
        $region52: #{tpu_custom_call.1} parent=47 // pred_fallthru
          _
      $region48: #{tpu_custom_call.1} parent=5 // pred_fallthru
        _
    $region6: #{tpu_custom_call.1} parent=1 // loop_footer
      %s19 = sadd.s32 1, %s15
    $region7: #{tpu_custom_call.1} parent=1 // loop_footer_branch
      %14 = sbr.rel target = $region3
    $region8: #{tpu_custom_call.1} parent=1 // loop_exit
      _
    %804 = vsyncpa [#allocation4], 1
    %s805 = scalar_lea.sflag [#allocation4], 1
    %806 = vsyncpa %s805, 1

</llo_original>
